<compile_context>
chip_gen: v7x
topology: tpu7x:2x2x1
jax: 0.10.0
libtpu: 0.0.40
codegen_flags: <defaults>
</compile_context>

<pallas_src>
import functools

import jax
import jax.numpy as jnp
import numpy as np
from jax import lax
from jax.experimental import pallas as pl
from jax.experimental.pallas import tpu as pltpu

BN_EPS = 1e-5


def _round_up(x, m):
    return ((x + m - 1) // m) * m


def _vmem_budget_bytes():
    """~75% of this generation's VMEM (~96 MiB on v5e/v6e, ~48 MiB on v7x)."""
    try:
        cap = int(pltpu.get_tpu_info().vmem_capacity_bytes)
    except Exception:
        cap = 64 * 1024 * 1024  # conservative fallback (v7x-sized)
    return (cap * 3) // 4


def _resident_spec(block_shape, index_map):
    """BlockSpec for a grid-invariant operand: single-buffered (it is never re-DMA'd)."""
    try:
        return pl.BlockSpec(block_shape, index_map, pipeline_mode=pl.Buffered(1))
    except TypeError:  # jax version without pipeline_mode on BlockSpec
        return pl.BlockSpec(block_shape, index_map)


def residual_block_kernel(x_ref, w_ref, b_ref, o_ref, *, matmul_dtype, precision):
    # x_ref: (tn, Dp) f32 original x (BN affine already folded into W'/b' in the wrapper)
    # w_ref: (t_out, Dp) matmul_dtype, PyTorch (out, in) layout
    # b_ref: (1, t_out) f32 folded bias
    x = x_ref[...]
    y = lax.dot_general(
        x.astype(matmul_dtype), w_ref[...],
        dimension_numbers=(((1,), (1,)), ((), ())),     # x @ W'.T (contract 'in' axes)
        preferred_element_type=jnp.float32,
        precision=precision,
    )
    y = jnp.maximum(y + b_ref[...], 0.0)                # MLPLayer ReLU

    t_out = o_ref.shape[-1]
    if t_out == x_ref.shape[-1]:
        x_res = x                                       # weight-resident path (single out tile)
    else:
        # Streamed-weight path: residual needs the matching out-feature slice of x.
        off = pl.multiple_of(pl.program_id(1) * t_out, 128)
        x_res = x_ref[:, pl.ds(off, t_out)]
    o_ref[...] = jnp.maximum(y + x_res, 0.0).astype(o_ref.dtype)   # residual add + ReLU


def residual_block(x, gamma, beta, w, b, *, matmul_dtype=jnp.bfloat16,
                   precision=None, _force_out_tile=None):
    """x: (N, D) f32; gamma/beta/b: (D,); w: (D, D) in PyTorch (out, in) layout."""
    x = jnp.asarray(x, jnp.float32)
    gamma = jnp.asarray(gamma, jnp.float32)
    beta = jnp.asarray(beta, jnp.float32)
    w = jnp.asarray(w, jnp.float32)
    b = jnp.asarray(b, jnp.float32)
    N, D = x.shape

    # BatchNorm1d(track_running_stats=False): batch statistics even in eval mode.
    mean = jnp.mean(x, axis=0)
    var = jnp.mean(jnp.square(x - mean), axis=0)          # biased variance (PyTorch BN)
    scale = gamma * lax.rsqrt(var + BN_EPS)
    shift = beta - mean * scale
    # Fold BN affine into the Linear layer:
    #   (x*scale + shift) @ W.T + b == x @ (W*scale).T + (b + W @ shift)
    w_f = w * scale[None, :]
    b_f = b + w @ shift

    # Feature alignment: 128 always; 256 (full v6e/v7x MXU tiles) once padding is amortized.
    Dp = _round_up(D, 256) if D >= 2048 else _round_up(D, 128)
    pad_d = Dp - D

    itemsize_w = jnp.dtype(matmul_dtype).itemsize
    budget = _vmem_budget_bytes()
    bias_bytes = 2 * 8 * Dp * 4                           # (1, Dp) sublane-padded, worst case

    def rows_bytes(tn, t_out):                            # double-buffered x + out tiles
        return tn * (2 * Dp * 4 + 2 * t_out * 4)

    # --- output-feature tile (weight residency vs. streaming) ---------------------------
    if _force_out_tile is not None:
        t_out = min(_round_up(int(_force_out_tile), 128), Dp)
    elif Dp * Dp * itemsize_w + bias_bytes + rows_bytes(128, Dp) <= budget:
        t_out = Dp                                        # whole weight resident (single-buffered)
    else:
        # Stream the weight over an inner output-feature grid axis (removes the VMEM cap on D).
        t_out = 256
        while (2 * t_out <= Dp and
               2 * (2 * t_out) * Dp * itemsize_w + bias_bytes
               + rows_bytes(256, 2 * t_out) <= budget):
            t_out *= 2
    weight_resident = (t_out == Dp)
    w_bytes = (Dp * Dp * itemsize_w) if weight_resident else (2 * t_out * Dp * itemsize_w)

    # --- batch tile: VMEM-budget-driven (per-grid-step overhead ~0.35us) -----------------
    cap = min(1024, _round_up(N, 8))
    tn = (budget - w_bytes - bias_bytes) // (2 * Dp * 4 + 2 * t_out * 4)
    tn = max(8, min(cap, int(tn)))
    tn = (tn // 256) * 256 if tn >= 256 else (tn // 8) * 8
    tn = max(8, tn)

    # --- pad / cast (skip pads entirely when D is already aligned; no batch padding) -----
    if pad_d:
        xp = jnp.pad(x, ((0, 0), (0, pad_d)))
        w_f = jnp.pad(w_f, ((0, pad_d), (0, pad_d)))
        b_f = jnp.pad(b_f, (0, pad_d))
    else:
        xp = x
    wp = w_f.astype(matmul_dtype)
    bp = b_f.reshape(1, Dp)

    grid = (pl.cdiv(N, tn), pl.cdiv(Dp, t_out))           # batch outer, out-feature inner

    # x stays resident across the inner (out-feature) axis: index_map is j-invariant.
    # (If profiling shows exposed x DMA at small Dp, bump to pipeline_mode=pl.Buffered(3).)
    x_spec = pl.BlockSpec((tn, Dp), lambda i, j: (i, 0))
    if weight_resident:
        w_spec = _resident_spec((Dp, Dp), lambda i, j: (0, 0))
        b_spec = _resident_spec((1, Dp), lambda i, j: (0, 0))
    else:
        w_spec = pl.BlockSpec((t_out, Dp), lambda i, j: (j, 0))
        b_spec = pl.BlockSpec((1, t_out), lambda i, j: (0, j))
    out_spec = pl.BlockSpec((tn, t_out), lambda i, j: (i, j))

    need = w_bytes + bias_bytes + rows_bytes(tn, t_out)
    vmem_limit = int(min(max(2 * need, 8 * 1024 * 1024), max(budget, need)))

    n_batch_tiles = pl.cdiv(N, tn)
    w_passes = 1 if weight_resident else n_batch_tiles
    cost = pl.CostEstimate(
        flops=2 * N * Dp * Dp + 4 * N * Dp,
        transcendentals=0,
        bytes_accessed=2 * N * Dp * 4 + w_passes * Dp * Dp * itemsize_w + Dp * 4,
    )

    out = pl.pallas_call(
        functools.partial(residual_block_kernel, matmul_dtype=matmul_dtype,
                          precision=precision),
        out_shape=jax.ShapeDtypeStruct((N, Dp), x.dtype),
        grid_spec=pltpu.PrefetchScalarGridSpec(
            num_scalar_prefetch=0,
            grid=grid,
            in_specs=[x_spec, w_spec, b_spec],
            out_specs=out_spec,
        ),
        compiler_params=pltpu.CompilerParams(
            # Both axes are fully independent (no accumulation); on v7x either can be
            # sharded across the two TensorCores.
            dimension_semantics=("parallel", "parallel"),
            vmem_limit_bytes=vmem_limit,
        ),
        cost_estimate=cost,
    )(xp, wp, bp)
    return out[:, :D] if pad_d else out


def residual_block_ref(x, gamma, beta, w, b):
    mean = jnp.mean(x, axis=0, keepdims=True)
    var = jnp.mean((x - mean) ** 2, axis=0, keepdims=True)
    z = (x - mean) / jnp.sqrt(var + BN_EPS) * gamma + beta
    y = jnp.maximum(z @ w.T + b, 0.0)
    return jnp.maximum(y + x, 0.0)


if __name__ == "__main__":
    # Small shapes consistent with the module: batch=8, hidden_dim=32.
    N, D = 8, 32
    key = jax.random.PRNGKey(0)
    kx, kg, kb, kw, kbi = jax.random.split(key, 5)

    x = jax.random.normal(kx, (N, D), dtype=jnp.float32)
    gamma = 1.0 + 0.1 * jax.random.normal(kg, (D,), dtype=jnp.float32)   # bn.weight
    beta = 0.1 * jax.random.normal(kb, (D,), dtype=jnp.float32)          # bn.bias
    bound = 1.0 / np.sqrt(D)
    w = jax.random.uniform(kw, (D, D), minval=-bound, maxval=bound, dtype=jnp.float32)
    b = jax.random.uniform(kbi, (D,), minval=-bound, maxval=bound, dtype=jnp.float32)

    ref = residual_block_ref(x, gamma, beta, w, b)

    # Exact-semantics path (f32 matmul operands, resident weight).
    out_f32 = residual_block(x, gamma, beta, w, b, matmul_dtype=jnp.float32)
    jax.block_until_ready(out_f32)
    np.testing.assert_allclose(np.asarray(out_f32), np.asarray(ref), rtol=1e-4, atol=1e-4)

    # Fast path (bf16 matmul operands, f32 accumulation on the MXU).
    out_bf16 = residual_block(x, gamma, beta, w, b, matmul_dtype=jnp.bfloat16)
    jax.block_until_ready(out_bf16)
    np.testing.assert_allclose(np.asarray(out_bf16), np.asarray(ref), rtol=5e-2, atol=5e-2)

    # Exercise the streamed-weight (output-feature-tiled) path at a small aligned shape.
    N2, D2 = 16, 256
    k2 = jax.random.split(key, 6)
    x2 = jax.random.normal(k2[0], (N2, D2), dtype=jnp.float32)
    g2 = 1.0 + 0.1 * jax.random.normal(k2[1], (D2,), dtype=jnp.float32)
    be2 = 0.1 * jax.random.normal(k2[2], (D2,), dtype=jnp.float32)
    bound2 = 1.0 / np.sqrt(D2)
    w2 = jax.random.uniform(k2[3], (D2, D2), minval=-bound2, maxval=bound2, dtype=jnp.float32)
    b2 = jax.random.uniform(k2[4], (D2,), minval=-bound2, maxval=bound2, dtype=jnp.float32)
    ref2 = residual_block_ref(x2, g2, be2, w2, b2)
    out2 = residual_block(x2, g2, be2, w2, b2, matmul_dtype=jnp.float32,
                          precision=lax.Precision.HIGHEST, _force_out_tile=128)
    jax.block_until_ready(out2)
    np.testing.assert_allclose(np.asarray(out2), np.asarray(ref2), rtol=1e-4, atol=1e-4)

    print("KERNEL_OK")
</pallas_src>

<mosaic_0001>
module attributes {stable_mosaic.version = 11 : i64} {
  func.func @residual_block_kernel(%arg0: i32, %arg1: i32, %arg2: memref<8x128xf32, #tpu.memory_space<vmem>>, %arg3: memref<128x128xf32, #tpu.memory_space<vmem>>, %arg4: memref<1x128xf32, #tpu.memory_space<vmem>>, %arg5: memref<8x128xf32, #tpu.memory_space<vmem>>) attributes {dimension_semantics = [#tpu.dimension_semantics<parallel>, #tpu.dimension_semantics<parallel>], iteration_bounds = array<i64: 1, 1>, scalar_prefetch = 0 : i64, scratch_operands = 0 : i64, tpu.core_type = #tpu.core_type<tc>, window_params = [{transform_indices = @transform_0, window_bounds = array<i64: 8, 128>}, {pipeline_mode = #tpu.pipeline_mode<synchronous>, transform_indices = @transform_1, window_bounds = array<i64: 128, 128>}, {pipeline_mode = #tpu.pipeline_mode<synchronous>, transform_indices = @transform_2, window_bounds = array<i64: 1, 128>}, {transform_indices = @transform_3, window_bounds = array<i64: 8, 128>}]} {
    %c0 = arith.constant 0 : index
    %c0_0 = arith.constant 0 : index
    %0 = vector.load %arg2[%c0, %c0_0] : memref<8x128xf32, #tpu.memory_space<vmem>>, vector<8x128xf32>
    %c0_1 = arith.constant 0 : index
    %c0_2 = arith.constant 0 : index
    %1 = vector.load %arg3[%c0_1, %c0_2] : memref<128x128xf32, #tpu.memory_space<vmem>>, vector<128x128xf32>
    %cst = arith.constant dense<0.000000e+00> : vector<8x128xf32>
    %2 = tpu.matmul %0, %1, %cst {dimension_numbers = #tpu.dot_dimension_numbers<[1], [1], [0], [0], [0, 0, 1, 0], [], []>} : vector<8x128xf32>, vector<128x128xf32>, vector<8x128xf32> -> vector<8x128xf32>
    %c0_3 = arith.constant 0 : index
    %c0_4 = arith.constant 0 : index
    %3 = vector.load %arg4[%c0_3, %c0_4] : memref<1x128xf32, #tpu.memory_space<vmem>>, vector<1x128xf32>
    %4 = vector.broadcast %3 : vector<1x128xf32> to vector<8x128xf32>
    %5 = arith.addf %2, %4 : vector<8x128xf32>
    %cst_5 = arith.constant 0.000000e+00 : f32
    %6 = vector.broadcast %cst_5 : f32 to vector<8x128xf32>
    %7 = arith.maximumf %5, %6 : vector<8x128xf32>
    %8 = arith.addf %7, %0 : vector<8x128xf32>
    %cst_6 = arith.constant 0.000000e+00 : f32
    %9 = vector.broadcast %cst_6 : f32 to vector<8x128xf32>
    %10 = arith.maximumf %8, %9 : vector<8x128xf32>
    %c0_7 = arith.constant 0 : index
    %c0_8 = arith.constant 0 : index
    %11 = vector.load %arg5[%c0_7, %c0_8] : memref<8x128xf32, #tpu.memory_space<vmem>>, vector<8x128xf32>
    tpu.vector_store %arg5[%c0_7, %c0_8], %10 {strides = array<i32>} : memref<8x128xf32, #tpu.memory_space<vmem>>, vector<8x128xf32>,
    return
  }
  func.func @transform_0(%arg0: i32, %arg1: i32) -> (i32, i32) {
    %c0_i32 = arith.constant 0 : i32
    %c0_i32_0 = arith.constant 0 : i32
    return %arg0, %c0_i32 : i32, i32
  }
  func.func @transform_1(%arg0: i32, %arg1: i32) -> (i32, i32) {
    %c0_i32 = arith.constant 0 : i32
    %c0_i32_0 = arith.constant 0 : i32
    %c0_i32_1 = arith.constant 0 : i32
    return %c0_i32, %c0_i32_0 : i32, i32
  }
  func.func @transform_2(%arg0: i32, %arg1: i32) -> (i32, i32) {
    %c0_i32 = arith.constant 0 : i32
    %c0_i32_0 = arith.constant 0 : i32
    %c0_i32_1 = arith.constant 0 : i32
    return %c0_i32, %c0_i32_0 : i32, i32
  }
  func.func @transform_3(%arg0: i32, %arg1: i32) -> (i32, i32) {
    %c0_i32 = arith.constant 0 : i32
    return %arg0, %arg1 : i32, i32
  }
}

</mosaic_0001>

<llo_original>
// kernel: tpu_custom_call.1
$region0: #{tpu_custom_call.1}
  #allocation0 [shape = 'u32[]', space=smem, size = 0x4, offset = 0x4, fixed_abs, tag = 'smem constant byte address 0x4 - core index']
  #allocation1 [shape = 'u32[144,128]{1,0:T(1,128)}', space=vmem, size = 0x12000, scoped, tag = 'internal scratch']
  %s0 = inlined_call_operand.hbm [shape: f32[8,128], index: 0, kind: input, shape index: {}]
  %s1 = inlined_call_operand.hbm [shape: f32[128,128], index: 1, kind: input, shape index: {}]
  %s2 = inlined_call_operand.vmem [shape: f32[1,128], index: 2, kind: input, shape index: {}]
  %s3 = inlined_call_operand.hbm [shape: f32[8,128], index: 3, kind: output, shape index: {}]
  %s4 = sld [smem:[#allocation0]]
  $region30: #{tpu_custom_call.1} parent=0
    _
  %s6 = ssub.s32 1, %s4
  %s7 = scalar_select 0, %s6, %s4
  $region1: #{tpu_custom_call.1} parent=0
    #allocation2 [shape = 'u8[4096]{0}', space=vmem, size = 0x1000, scoped, tag = 'input window, operand 0, single buffered']
    #allocation3 [shape = 's32[1]{0}', space=sflag, size = 0x4, scoped, tag = 'scoped memory for tpu_custom_call.1']
    #allocation4 [shape = 's32[1]{0}', space=sflag, size = 0x4, scoped, tag = 'scoped memory for tpu_custom_call.1']
    #allocation5 [shape = 'u8[65536]{0}', space=vmem, size = 0x10000, scoped, tag = 'input window, operand 1, single buffered']
    #allocation6 [shape = 's32[1]{0}', space=sflag, size = 0x4, scoped, tag = 'scoped memory for tpu_custom_call.1']
    #allocation7 [shape = 'u8[4096]{0}', space=vmem, size = 0x1000, scoped, tag = 'output window, operand 0, single buffered']
    %8 = vsyncpa [#allocation3], 0
    %9 = vsyncpa [#allocation6], 0
    %10 = vsyncpa [#allocation4], 0
    // Predicated region
    $region2: #{tpu_custom_call.1} parent=1 // pred_check
      _
    $region3: #{tpu_custom_call.1} parent=1 // pred_check_branch
      %12 = sbr.rel (0) target = $region5
    $region4: #{tpu_custom_call.1} parent=1 // pred_region
      %s14 = ssub.s32 128, 128
      %15 = vsyncadd [#allocation3], %s14
      %s17 = sshll.u32 [#allocation2], 4
      %s18 = int_to_ptr.vmem [resolvable:$true] %s17
      %20 = dma.hbm_to_vmem [thread:$0]  %s0, 128, %s18, [#allocation3]
    $region5: #{tpu_custom_call.1} parent=1 // pred_fallthru
      _
    // Predicated region
    $region6: #{tpu_custom_call.1} parent=1 // pred_check
      _
    $region7: #{tpu_custom_call.1} parent=1 // pred_check_branch
      %22 = sbr.rel (0) target = $region9
    $region8: #{tpu_custom_call.1} parent=1 // pred_region
      %s24 = ssub.s32 2048, 2048
      %25 = vsyncadd [#allocation6], %s24
      %s26 = sshll.u32 [#allocation5], 4
      %s27 = int_to_ptr.vmem [resolvable:$true] %s26
      %32 = dma.hbm_to_vmem [thread:$0]  %s1, 2048, %s27, [#allocation6], 128, 128, 8
    $region9: #{tpu_custom_call.1} parent=1 // pred_fallthru
      _
    // Predicated region
    $region10: #{tpu_custom_call.1} parent=1 // pred_check
      _
    $region11: #{tpu_custom_call.1} parent=1 // pred_check_branch
      %34 = sbr.rel (0) target = $region13
    $region12: #{tpu_custom_call.1} parent=1 // pred_region
      _
    $region13: #{tpu_custom_call.1} parent=1 // pred_fallthru
      _
    // Predicated region
    $region14: #{tpu_custom_call.1} parent=1 // pred_check
      _
    $region15: #{tpu_custom_call.1} parent=1 // pred_check_branch
      %36 = sbr.rel (0) target = $region17
    $region16: #{tpu_custom_call.1} parent=1 // pred_region
      %37 = dma.done [#allocation3], 128
    $region17: #{tpu_custom_call.1} parent=1 // pred_fallthru
      _
    // Predicated region
    $region18: #{tpu_custom_call.1} parent=1 // pred_check
      _
    $region19: #{tpu_custom_call.1} parent=1 // pred_check_branch
      %39 = sbr.rel (0) target = $region21
    $region20: #{tpu_custom_call.1} parent=1 // pred_region
      %40 = dma.done [#allocation6], 2048
    $region21: #{tpu_custom_call.1} parent=1 // pred_fallthru
      _
    %v41 = vld [vmem:[#allocation2] sm:$0xff]
    %v42 = vld [vmem:[#allocation5] sm:$0xff]
    %v43 = vld [vmem:[#allocation5 + $0x8] sm:$0xff]
    %v44 = vld [vmem:[#allocation5 + $0x10] sm:$0xff]
    %v45 = vld [vmem:[#allocation5 + $0x18] sm:$0xff]
    %v46 = vld [vmem:[#allocation5 + $0x20] sm:$0xff]
    %v47 = vld [vmem:[#allocation5 + $0x28] sm:$0xff]
    %v48 = vld [vmem:[#allocation5 + $0x30] sm:$0xff]
    %v49 = vld [vmem:[#allocation5 + $0x38] sm:$0xff]
    %v50 = vld [vmem:[#allocation5 + $0x40] sm:$0xff]
    %v51 = vld [vmem:[#allocation5 + $0x48] sm:$0xff]
    %v52 = vld [vmem:[#allocation5 + $0x50] sm:$0xff]
    %v53 = vld [vmem:[#allocation5 + $0x58] sm:$0xff]
    %v54 = vld [vmem:[#allocation5 + $0x60] sm:$0xff]
    %v55 = vld [vmem:[#allocation5 + $0x68] sm:$0xff]
    %v56 = vld [vmem:[#allocation5 + $0x70] sm:$0xff]
    %v57 = vld [vmem:[#allocation5 + $0x78] sm:$0xff]
    %v58 = vld [vmem:[%s2] sm:$0x1]
    %v60 = vlaneseq
    %v61 = vshrl.u32 %v60, 7
    %v62 = vsub.s32 0, %v61
    %v63 = vrot.slane %v58, %v62
    %65 = vmatprep.subr.mxu0 0.0
    %66 = vmatpush1.xpose.msra.mxu0 %v42
    %67 = vmatprep.subr.mxu0 0.0
    %68 = vmatpush1.xpose.msra.mxu0 %v43
    %69 = vmatprep.subr.mxu0 0.0
    %70 = vmatpush1.xpose.msra.mxu0 %v44
    %71 = vmatprep.subr.mxu0 0.0
    %72 = vmatpush1.xpose.msra.mxu0 %v45
    %73 = vmatprep.subr.mxu0 0.0
    %74 = vmatpush1.xpose.msra.mxu0 %v46
    %75 = vmatprep.subr.mxu0 0.0
    %76 = vmatpush1.xpose.msra.mxu0 %v47
    %77 = vmatprep.subr.mxu0 0.0
    %78 = vmatpush1.xpose.msra.mxu0 %v48
    %79 = vmatprep.subr.mxu0 0.0
    %80 = vmatpush1.xpose.msra.mxu0 %v49
    %81 = vmatprep.subr.mxu0 0.0
    %82 = vmatpush1.xpose.msra.mxu0 %v50
    %83 = vmatprep.subr.mxu0 0.0
    %84 = vmatpush1.xpose.msra.mxu0 %v51
    %85 = vmatprep.subr.mxu0 0.0
    %86 = vmatpush1.xpose.msra.mxu0 %v52
    %87 = vmatprep.subr.mxu0 0.0
    %88 = vmatpush1.xpose.msra.mxu0 %v53
    %89 = vmatprep.subr.mxu0 0.0
    %90 = vmatpush1.xpose.msra.mxu0 %v54
    %91 = vmatprep.subr.mxu0 0.0
    %92 = vmatpush1.xpose.msra.mxu0 %v55
    %93 = vmatprep.subr.mxu0 0.0
    %94 = vmatpush1.xpose.msra.mxu0 %v56
    %95 = vmatprep.subr.mxu0 0.0
    %96 = vmatpush1.xpose.msra.mxu0 %v57
    %97 = vmatprep.subr.mxu0 0.0
    %98 = vmatpush1.xpose.msra.mxu0 0.0
    %99 = vmatprep.subr.mxu0 0.0
    %100 = vmatpush1.xpose.msra.mxu0 0.0
    %101 = vmatprep.subr.mxu0 0.0
    %102 = vmatpush1.xpose.msra.mxu0 0.0
    %103 = vmatprep.subr.mxu0 0.0
    %104 = vmatpush1.xpose.msra.mxu0 0.0
    %105 = vmatprep.subr.mxu0 0.0
    %106 = vmatpush1.xpose.msra.mxu0 0.0
    %107 = vmatprep.subr.mxu0 0.0
    %108 = vmatpush1.xpose.msra.mxu0 0.0
    %109 = vmatprep.subr.mxu0 0.0
    %110 = vmatpush1.xpose.msra.mxu0 0.0
    %111 = vmatprep.subr.mxu0 0.0
    %112 = vmatpush1.xpose.msra.mxu0 0.0
    %113 = vmatprep.subr.mxu0 0.0
    %114 = vmatpush1.xpose.msra.mxu0 0.0
    %115 = vmatprep.subr.mxu0 0.0
    %116 = vmatpush1.xpose.msra.mxu0 0.0
    %117 = vmatprep.subr.mxu0 0.0
    %118 = vmatpush1.xpose.msra.mxu0 0.0
    %119 = vmatprep.subr.mxu0 0.0
    %120 = vmatpush1.xpose.msra.mxu0 0.0
    %121 = vmatprep.subr.mxu0 0.0
    %122 = vmatpush1.xpose.msra.mxu0 0.0
    %123 = vmatprep.subr.mxu0 0.0
    %124 = vmatpush1.xpose.msra.mxu0 0.0
    %125 = vmatprep.subr.mxu0 0.0
    %126 = vmatpush1.xpose.msra.mxu0 0.0
    %127 = vmatprep.subr.mxu0 0.0
    %128 = vmatpush1.xpose.msra.mxu0 0.0
    %129 = vmatprep.mubr.f32.mxu0 0.0
    %130 = vmatmul.mubr.f32.gmra.mrb[0].mxu0 %v41
    %v131 = vpop.f32.mrb[0].mxu0
    %v132 = vadd.f32 %v63, %v131
    %v133 = vpop.f32.mrb[0].mxu0
    %134 = vdwg.mxu0
    %v135 = vmax.f32 %v132, 0.0
    %v136 = vadd.f32 %v135, %v41
    %v137 = vmax.f32 %v136, 0.0
    %138 = vst [vmem:[#allocation7] sm:$0xff] %v137
    // Predicated region
    $region22: #{tpu_custom_call.1} parent=1 // pred_check
      _
    $region23: #{tpu_custom_call.1} parent=1 // pred_check_branch
      %140 = sbr.rel (0) target = $region25
    $region24: #{tpu_custom_call.1} parent=1 // pred_region
      %s142 = ssub.s32 128, 128
      %143 = vsyncadd [#allocation4], %s142
      %s145 = sshll.u32 [#allocation7], 4
      %s146 = int_to_ptr.vmem [resolvable:$true] %s145
      %148 = dma.vmem_to_hbm [thread:$0]  %s146, 128, %s3, [#allocation4]
    $region25: #{tpu_custom_call.1} parent=1 // pred_fallthru
      _
    // Predicated region
    $region26: #{tpu_custom_call.1} parent=1 // pred_check
      _
    $region27: #{tpu_custom_call.1} parent=1 // pred_check_branch
      %150 = sbr.rel (0) target = $region29
    $region28: #{tpu_custom_call.1} parent=1 // pred_region
      %151 = dma.done [#allocation4], 128
    $region29: #{tpu_custom_call.1} parent=1 // pred_fallthru
      _
    %152 = vsyncpa [#allocation3], 1
    %153 = vsyncpa [#allocation6], 1
    %154 = vsyncpa [#allocation4], 1

</llo_original>
